<compile_context>
chip_gen: v6e
topology: v6e:2x2x1
jax: 0.10.0
libtpu: 0.0.40
codegen_flags: <defaults>
</compile_context>

<pallas_src>
import functools

import jax
import jax.numpy as jnp
from jax.experimental import pallas as pl
from jax.experimental.pallas import tpu as pltpu


def _relu_kernel(x_ref, o_ref):
    # Elementwise ReLU on the whole VMEM tile (single-pass VPU op).
    x = x_ref[...]
    o_ref[...] = jnp.maximum(x, jnp.zeros((), x.dtype))


def _sublane(dtype) -> int:
    # Native sublane tile: 8 rows at 32-bit; sub-32-bit dtypes pack along
    # sublanes (16 for bf16/f16, 32 for int8/fp8).
    itemsize = max(1, jnp.dtype(dtype).itemsize)
    return max(8, 8 * (4 // itemsize))


def _widest_lane(n: int) -> int:
    # Widest lane dimension (multiple of 128) that divides n exactly.
    for cand in (4096, 2048, 1024, 512, 256, 128):
        if n % cand == 0:
            return cand
    return 0


@functools.lru_cache(maxsize=1)
def _tpu_config():
    """Generation-dependent tiling config (safe fallbacks if detection fails)."""
    kind = ""
    try:
        kind = jax.devices()[0].device_kind.lower()
    except Exception:
        pass
    if "v7" in kind or "7x" in kind:
        # 2 TCs, 3.2 TB/s HBM, 64 MiB physical VMEM (32 MiB scoped default).
        return {
            "small_bytes": 12 << 20,
            "block_bytes": 6 << 20,          # live VMEM ~ 4x6 = 24 MiB
            "semantics": getattr(pltpu, "CORE_PARALLEL", "parallel"),
            "vmem_limit": 40 << 20,          # headroom above the 32 MiB default
        }
    if "v6" in kind:
        # 1 TC, ~1.35 TB/s HBM, 32 MiB scoped default.
        return {
            "small_bytes": 12 << 20,
            "block_bytes": 6 << 20,          # live VMEM ~ 24 MiB, no flag needed
            "semantics": "parallel",
            "vmem_limit": None,
        }
    if "v5" in kind:
        # 1 TC, ~0.82 TB/s HBM, 16 MiB scoped default -> keep blocks small.
        return {
            "small_bytes": 6 << 20,
            "block_bytes": 2 << 20,          # live VMEM ~ 8 MiB
            "semantics": "parallel",
            "vmem_limit": None,
        }
    # Unknown generation: conservative v5e-like settings.
    return {
        "small_bytes": 4 << 20,
        "block_bytes": 2 << 20,
        "semantics": "parallel",
        "vmem_limit": None,
    }


def _relu_lane_dense(flat: jax.Array, lane: int, cfg) -> jax.Array:
    """ReLU over a flat array whose size is an exact multiple of `lane`."""
    dtype = flat.dtype
    itemsize = jnp.dtype(dtype).itemsize
    n = flat.size
    rows = n // lane
    x2d = flat.reshape(rows, lane)
    total_bytes = n * itemsize
    cost = pl.CostEstimate(flops=n, transcendentals=0,
                           bytes_accessed=2 * total_bytes)

    if total_bytes <= cfg["small_bytes"]:
        # Small path: whole array resident in VMEM, no grid / pipeline overhead.
        out2d = pl.pallas_call(
            _relu_kernel,
            out_shape=jax.ShapeDtypeStruct((rows, lane), dtype),
            in_specs=[pl.BlockSpec(memory_space=pltpu.MemorySpace.VMEM)],
            out_specs=pl.BlockSpec(memory_space=pltpu.MemorySpace.VMEM),
            cost_estimate=cost,
        )(x2d)
        return out2d.reshape(-1)

    # Large path: lane-dense streaming blocks, auto double-buffered.
    sub = _sublane(dtype)
    block_rows = max(sub, cfg["block_bytes"] // (lane * itemsize))
    block_rows = (block_rows // sub) * sub
    block_rows = min(rows, block_rows)
    if rows % block_rows:
        # Prefer a block size that divides rows (all blocks full-size, all
        # stores unmasked, all DMAs identical) without shrinking below ~half
        # of the bandwidth-optimal target.
        cand = block_rows
        floor = max(sub, block_rows // 2)
        while cand >= floor:
            if rows % cand == 0:
                block_rows = cand
                break
            cand -= sub
    grid = (pl.cdiv(rows, block_rows),)

    out2d = pl.pallas_call(
        _relu_kernel,
        out_shape=jax.ShapeDtypeStruct((rows, lane), dtype),
        grid=grid,
        in_specs=[pl.BlockSpec((block_rows, lane), lambda i: (i, 0))],
        out_specs=pl.BlockSpec((block_rows, lane), lambda i: (i, 0)),
        compiler_params=pltpu.CompilerParams(
            dimension_semantics=(cfg["semantics"],),
            vmem_limit_bytes=cfg["vmem_limit"],
        ),
        cost_estimate=cost,
    )(x2d)
    return out2d.reshape(-1)


def my_relu(x: jax.Array) -> jax.Array:
    """Pallas TPU ReLU matching MyReLUModule.forward semantics exactly."""
    orig_shape = x.shape
    dtype = x.dtype
    n = x.size
    if n == 0:
        return x

    cfg = _tpu_config()
    itemsize = jnp.dtype(dtype).itemsize
    flat = x.reshape(-1)
    lane = _widest_lane(n)

    if lane:
        # Common case: element count divides by 128 -> fully lane-dense,
        # no padding anywhere on the hot path.
        return _relu_lane_dense(flat, lane, cfg).reshape(orig_shape)

    total_bytes = n * itemsize
    if total_bytes <= cfg["small_bytes"]:
        # Ragged but small: one whole-array block (full-dims block, so the
        # (8,128) divisibility rule does not apply).  No pad, no slice.
        cost = pl.CostEstimate(flops=n, transcendentals=0,
                               bytes_accessed=2 * total_bytes)
        out = pl.pallas_call(
            _relu_kernel,
            out_shape=jax.ShapeDtypeStruct((n,), dtype),
            in_specs=[pl.BlockSpec(memory_space=pltpu.MemorySpace.VMEM)],
            out_specs=pl.BlockSpec(memory_space=pltpu.MemorySpace.VMEM),
            cost_estimate=cost,
        )(flat)
        return out.reshape(orig_shape)

    # Large + ragged (rare): stream the 128-aligned prefix through the gridded
    # kernel and handle the <128-element tail with a tiny elementwise max.
    # TODO(synk): a masked final block (pl.when + pltpu.store with a lane mask)
    # inside the kernel would avoid the concatenate copy entirely.
    n_main = (n // 128) * 128
    main = _relu_lane_dense(flat[:n_main], _widest_lane(n_main), cfg)
    tail = jnp.maximum(flat[n_main:], jnp.zeros((), dtype))
    return jnp.concatenate([main, tail]).reshape(orig_shape)


if __name__ == "__main__":
    key = jax.random.PRNGKey(0)
    # Small NCHW input consistent with a conv-style activation tensor.
    x = jax.random.normal(key, (2, 4, 16, 16), dtype=jnp.float32)

    y = my_relu(x)
    jax.block_until_ready(y)

    # Sanity check against the pure-JAX reference.
    y_ref = jnp.maximum(x, 0.0)
    assert y.shape == x.shape and y.dtype == x.dtype
    assert jnp.allclose(y, y_ref), "ReLU kernel mismatch"

    print("KERNEL_OK")
</pallas_src>

<mosaic_0001>
module attributes {stable_mosaic.version = 11 : i64} {
  func.func @_relu_kernel(%arg0: memref<1x2048xf32, #tpu.memory_space<vmem>>, %arg1: memref<1x2048xf32, #tpu.memory_space<vmem>>) attributes {dimension_semantics = [], scalar_prefetch = 0 : i64, scratch_operands = 0 : i64, tpu.core_type = #tpu.core_type<tc>} {
    %c0 = arith.constant 0 : index
    %c0_0 = arith.constant 0 : index
    %0 = vector.load %arg0[%c0, %c0_0] : memref<1x2048xf32, #tpu.memory_space<vmem>>, vector<1x2048xf32>
    %cst = arith.constant 0.000000e+00 : f32
    %1 = vector.broadcast %cst : f32 to vector<1x2048xf32>
    %2 = arith.maximumf %0, %1 : vector<1x2048xf32>
    %c0_1 = arith.constant 0 : index
    %c0_2 = arith.constant 0 : index
    %3 = vector.load %arg1[%c0_1, %c0_2] : memref<1x2048xf32, #tpu.memory_space<vmem>>, vector<1x2048xf32>
    tpu.vector_store %arg1[%c0_1, %c0_2], %2 {strides = array<i32>} : memref<1x2048xf32, #tpu.memory_space<vmem>>, vector<1x2048xf32>,
    return
  }
}

</mosaic_0001>

<llo_original>
// kernel: tpu_custom_call.1
$region0: #{tpu_custom_call.1}
  #allocation0 [shape = 'u32[]', space=smem, size = 0x4, offset = 0x4, fixed_abs, tag = 'smem constant byte address 0x4 - core index']
  #allocation1 [shape = 'u32[144,128]{1,0:T(1,128)}', space=vmem, size = 0x12000, scoped, tag = 'internal scratch']
  %s0 = inlined_call_operand.hbm [shape: f32[1,2048], index: 0, kind: input, shape index: {}]
  %s1 = inlined_call_operand.hbm [shape: f32[1,2048], index: 1, kind: output, shape index: {}]
  %s2 = sld [smem:[#allocation0]]
  $region18: #{tpu_custom_call.1} parent=0
    _
  %s4 = ssub.s32 1, %s2
  %s5 = scalar_select 0, %s4, %s2
  $region1: #{tpu_custom_call.1} parent=0
    #allocation2 [shape = 'u8[8192]{0}', space=vmem, size = 0x2000, scoped, tag = 'input window, operand 0, single buffered']
    #allocation3 [shape = 's32[1]{0}', space=sflag, size = 0x4, scoped, tag = 'scoped memory for tpu_custom_call.1']
    #allocation4 [shape = 's32[1]{0}', space=sflag, size = 0x4, scoped, tag = 'scoped memory for tpu_custom_call.1']
    #allocation5 [shape = 'u8[8192]{0}', space=vmem, size = 0x2000, scoped, tag = 'output window, operand 0, single buffered']
    %6 = vsyncpa [#allocation3], 0
    %7 = vsyncpa [#allocation4], 0
    // Predicated region
    $region2: #{tpu_custom_call.1} parent=1 // pred_check
      _
    $region3: #{tpu_custom_call.1} parent=1 // pred_check_branch
      %9 = sbr.rel (0) target = $region5
    $region4: #{tpu_custom_call.1} parent=1 // pred_region
      %s11 = ssub.s32 256, 256
      %12 = vsyncadd [#allocation3], %s11
      %s14 = sshll.u32 [#allocation2], 4
      %s15 = int_to_ptr.vmem [resolvable:$true] %s14
      %17 = dma.hbm_to_vmem [thread:$0]  %s0, 256, %s15, [#allocation3]
    $region5: #{tpu_custom_call.1} parent=1 // pred_fallthru
      _
    // Predicated region
    $region6: #{tpu_custom_call.1} parent=1 // pred_check
      _
    $region7: #{tpu_custom_call.1} parent=1 // pred_check_branch
      %19 = sbr.rel (0) target = $region9
    $region8: #{tpu_custom_call.1} parent=1 // pred_region
      %20 = dma.done [#allocation3], 256
    $region9: #{tpu_custom_call.1} parent=1 // pred_fallthru
      _
    %v21 = vld [vmem:[#allocation2] sm:$0xff]
    %v22 = vld [vmem:[#allocation2 + $0x8] sm:$0xff]
    %v23 = vmax.f32 %v21, 0.0
    %v24 = vmax.f32 %v22, 0.0
    %25 = vst [vmem:[#allocation5] sm:$0xff] %v23
    %26 = vst [vmem:[#allocation5 + $0x8] sm:$0xff] %v24
    // Predicated region
    $region10: #{tpu_custom_call.1} parent=1 // pred_check
      _
    $region11: #{tpu_custom_call.1} parent=1 // pred_check_branch
      %28 = sbr.rel (0) target = $region13
    $region12: #{tpu_custom_call.1} parent=1 // pred_region
      %s30 = ssub.s32 256, 256
      %31 = vsyncadd [#allocation4], %s30
      %s33 = sshll.u32 [#allocation5], 4
      %s34 = int_to_ptr.vmem [resolvable:$true] %s33
      %36 = dma.vmem_to_hbm [thread:$0]  %s34, 256, %s1, [#allocation4]
    $region13: #{tpu_custom_call.1} parent=1 // pred_fallthru
      _
    // Predicated region
    $region14: #{tpu_custom_call.1} parent=1 // pred_check
      _
    $region15: #{tpu_custom_call.1} parent=1 // pred_check_branch
      %38 = sbr.rel (0) target = $region17
    $region16: #{tpu_custom_call.1} parent=1 // pred_region
      %39 = dma.done [#allocation4], 256
    $region17: #{tpu_custom_call.1} parent=1 // pred_fallthru
      _
    %40 = vsyncpa [#allocation3], 1
    %41 = vsyncpa [#allocation4], 1

</llo_original>
